<compile_context>
chip_gen: v7x
topology: tpu7x:2x2x1
jax: 0.10.0
libtpu: 0.0.40
codegen_flags: <defaults>
</compile_context>

<pallas_src>
import jax
import jax.numpy as jnp
from jax import lax
from jax.experimental import pallas as pl
from jax.experimental.pallas import tpu as pltpu

HIDDEN = 16
INPUT = 1


def rnn_kernel(x_ref, h0_ref, wih_ref, whh_ref, b_ref, fcw_ref, fcb_ref,
               out_ref, hn_ref, prein_ref, hist_ref):
    # x_ref:    (S, B, 1)    h0_ref:  (B, H)
    # wih_ref:  (1, H)       whh_ref: (H, H)     b_ref: (1, H)  (= b_ih + b_hh)
    # fcw_ref:  (H, 1)       fcb_ref: (1, 1)
    # out_ref:  (S, 1)       hn_ref:  (B, H)
    # prein_ref:(S, B, H)    hist_ref:(S, H)      -- VMEM scratch
    S = x_ref.shape[0]
    B = h0_ref.shape[0]

    wih = wih_ref[...]                                    # (1, H)
    whh = whh_ref[...]                                    # (H, H)
    b = b_ref[...]                                        # (1, H)

    # (1) Hoisted input projection for all timesteps: pure VPU broadcast
    #     (INPUT == 1, so x_t @ W_ih.T is just x_t * wih), bias folded in.
    prein_ref[...] = x_ref[...] * wih + b                 # (S, B, H)

    # (2) Serial recurrence: per step only one (B,H)@(H,H) MXU dot + VPU add + EUP tanh.
    #     (On v5e/v6e a VPU formulation of the 16x16 dot may be worth benchmarking,
    #      but the MXU dot is kept here for simplicity / v7x.)
    def step(t, h):
        pre = prein_ref[t] + jnp.dot(h, whh,
                                     preferred_element_type=jnp.float32)   # (B, H)
        h_new = jnp.tanh(pre)
        # Stash the last-batch row for the post-loop FC (off the critical h-chain).
        hist_ref[pl.ds(t, 1), :] = h_new[B - 1:B, :]
        return h_new

    h_final = lax.fori_loop(0, S, step, h0_ref[...], unroll=True)
    hn_ref[...] = h_final

    # (3) Single post-loop FC: (S,H) @ (H,1) + bias, one store.
    hist = hist_ref[...]                                   # (S, H)
    out_ref[...] = (jnp.dot(hist, fcw_ref[...],
                            preferred_element_type=jnp.float32)
                    + fcb_ref[...])                        # (S, 1)


def rnn_forward(x, hidden, params):
    """x: (S, B, 1) float32, hidden: (1, B, H) float32."""
    S, B, _ = x.shape
    H = HIDDEN
    w_ih, w_hh, b_ih, b_hh, fc_w, fc_b = params

    wih_t = w_ih.T                       # (1, H)
    whh_t = w_hh.T                       # (H, H)
    b = (b_ih + b_hh).reshape(1, H)      # (1, H)
    fcw_t = fc_w.T                       # (H, 1)
    fcb = fc_b.reshape(1, 1)             # (1, 1)
    h0 = hidden[0]                       # (B, H)

    vmem = pl.BlockSpec(memory_space=pltpu.MemorySpace.VMEM)
    out, hn = pl.pallas_call(
        rnn_kernel,
        out_shape=(
            jax.ShapeDtypeStruct((S, 1), jnp.float32),
            jax.ShapeDtypeStruct((B, H), jnp.float32),
        ),
        in_specs=[vmem] * 7,
        out_specs=(vmem, vmem),
        scratch_shapes=[
            pltpu.VMEM((S, B, H), jnp.float32),   # hoisted input projection
            pltpu.VMEM((S, H), jnp.float32),      # per-step last-batch hidden rows
        ],
    )(x, h0, wih_t, whh_t, b, fcw_t, fcb)

    return out, hn.reshape(1, B, H)


def init_params(key):
    """Deterministic params matching torch.nn.RNN(1,16) + Linear(16,1) shapes."""
    H, I = HIDDEN, INPUT
    ks = jax.random.split(key, 6)
    bound_rnn = 1.0 / jnp.sqrt(H)
    bound_fc = 1.0 / jnp.sqrt(H)
    w_ih = jax.random.uniform(ks[0], (H, I), jnp.float32, -bound_rnn, bound_rnn)
    w_hh = jax.random.uniform(ks[1], (H, H), jnp.float32, -bound_rnn, bound_rnn)
    b_ih = jax.random.uniform(ks[2], (H,), jnp.float32, -bound_rnn, bound_rnn)
    b_hh = jax.random.uniform(ks[3], (H,), jnp.float32, -bound_rnn, bound_rnn)
    fc_w = jax.random.uniform(ks[4], (1, H), jnp.float32, -bound_fc, bound_fc)
    fc_b = jax.random.uniform(ks[5], (1,), jnp.float32, -bound_fc, bound_fc)
    return w_ih, w_hh, b_ih, b_hh, fc_w, fc_b


def reference_forward(x, hidden, params):
    """Pure-JAX replica of the PyTorch forward, for verification."""
    w_ih, w_hh, b_ih, b_hh, fc_w, fc_b = params
    h = hidden[0]
    outs = []
    for t in range(x.shape[0]):
        h = jnp.tanh(x[t] @ w_ih.T + b_ih + h @ w_hh.T + b_hh)
        outs.append(h)
    output = jnp.stack(outs, axis=0)          # (S, B, H)
    fc_out = output[:, -1] @ fc_w.T + fc_b    # (S, 1)
    return fc_out, h[None]


if __name__ == "__main__":
    key = jax.random.PRNGKey(0)
    k_p, k_x, k_h = jax.random.split(key, 3)

    S, B = 8, 2
    params = init_params(k_p)
    x = jax.random.normal(k_x, (S, B, INPUT), jnp.float32)
    hidden = jax.random.normal(k_h, (1, B, HIDDEN), jnp.float32)

    out, hn = rnn_forward(x, hidden, params)
    jax.block_until_ready((out, hn))

    ref_out, ref_hn = reference_forward(x, hidden, params)
    assert out.shape == (S, 1) and hn.shape == (1, B, HIDDEN)
    assert jnp.allclose(out, ref_out, atol=1e-5), "fc output mismatch"
    assert jnp.allclose(hn, ref_hn, atol=1e-5), "hidden state mismatch"

    print("KERNEL_OK")
</pallas_src>

<mosaic_0001>
module attributes {stable_mosaic.version = 11 : i64} {
  func.func @rnn_kernel(%arg0: memref<8x2x1xf32, #tpu.memory_space<vmem>>, %arg1: memref<2x16xf32, #tpu.memory_space<vmem>>, %arg2: memref<1x16xf32, #tpu.memory_space<vmem>>, %arg3: memref<16x16xf32, #tpu.memory_space<vmem>>, %arg4: memref<1x16xf32, #tpu.memory_space<vmem>>, %arg5: memref<16x1xf32, #tpu.memory_space<vmem>>, %arg6: memref<1x1xf32, #tpu.memory_space<vmem>>, %arg7: memref<8x1xf32, #tpu.memory_space<vmem>>, %arg8: memref<2x16xf32, #tpu.memory_space<vmem>>, %arg9: memref<8x2x16xf32, #tpu.memory_space<vmem>>, %arg10: memref<8x16xf32, #tpu.memory_space<vmem>>) attributes {dimension_semantics = [], scalar_prefetch = 0 : i64, scratch_operands = 2 : i64, tpu.core_type = #tpu.core_type<tc>} {
    %c0 = arith.constant 0 : index
    %c0_0 = arith.constant 0 : index
    %0 = vector.load %arg2[%c0, %c0_0] : memref<1x16xf32, #tpu.memory_space<vmem>>, vector<1x16xf32>
    %c0_1 = arith.constant 0 : index
    %c0_2 = arith.constant 0 : index
    %1 = vector.load %arg3[%c0_1, %c0_2] : memref<16x16xf32, #tpu.memory_space<vmem>>, vector<16x16xf32>
    %c0_3 = arith.constant 0 : index
    %c0_4 = arith.constant 0 : index
    %2 = vector.load %arg4[%c0_3, %c0_4] : memref<1x16xf32, #tpu.memory_space<vmem>>, vector<1x16xf32>
    %c0_5 = arith.constant 0 : index
    %c0_6 = arith.constant 0 : index
    %c0_7 = arith.constant 0 : index
    %3 = vector.load %arg0[%c0_5, %c0_6, %c0_7] : memref<8x2x1xf32, #tpu.memory_space<vmem>>, vector<8x2x1xf32>
    %4 = vector.shape_cast %0 : vector<1x16xf32> to vector<1x1x16xf32>
    %5 = vector.broadcast %3 : vector<8x2x1xf32> to vector<8x2x16xf32>
    %6 = vector.broadcast %4 : vector<1x1x16xf32> to vector<8x2x16xf32>
    %7 = arith.mulf %5, %6 : vector<8x2x16xf32>
    %8 = vector.shape_cast %2 : vector<1x16xf32> to vector<1x1x16xf32>
    %9 = vector.broadcast %8 : vector<1x1x16xf32> to vector<8x2x16xf32>
    %10 = arith.addf %7, %9 : vector<8x2x16xf32>
    %c0_8 = arith.constant 0 : index
    %c0_9 = arith.constant 0 : index
    %c0_10 = arith.constant 0 : index
    %11 = vector.load %arg9[%c0_8, %c0_9, %c0_10] : memref<8x2x16xf32, #tpu.memory_space<vmem>>, vector<8x2x16xf32>
    tpu.vector_store %arg9[%c0_8, %c0_9, %c0_10], %10 {strides = array<i32>} : memref<8x2x16xf32, #tpu.memory_space<vmem>>, vector<8x2x16xf32>,
    %c0_11 = arith.constant 0 : index
    %c0_12 = arith.constant 0 : index
    %12 = vector.load %arg1[%c0_11, %c0_12] : memref<2x16xf32, #tpu.memory_space<vmem>>, vector<2x16xf32>
    %c0_i32 = arith.constant 0 : i32
    %13 = arith.index_cast %c0_i32 : i32 to index
    %c0_13 = arith.constant 0 : index
    %c0_14 = arith.constant 0 : index
    %14 = vector.load %arg9[%13, %c0_13, %c0_14] : memref<8x2x16xf32, #tpu.memory_space<vmem>>, vector<1x2x16xf32>
    %15 = vector.shape_cast %14 : vector<1x2x16xf32> to vector<2x16xf32>
    %cst = arith.constant dense<0.000000e+00> : vector<2x16xf32>
    %16 = tpu.matmul %12, %1, %cst {dimension_numbers = #tpu.dot_dimension_numbers<[1], [0], [0], [1], [0, 0, 1, 1], [], []>} : vector<2x16xf32>, vector<16x16xf32>, vector<2x16xf32> -> vector<2x16xf32>
    %17 = arith.addf %15, %16 : vector<2x16xf32>
    %18 = math.tanh %17 : vector<2x16xf32>
    %19 = vector.extract_strided_slice %18 {offsets = [1, 0], sizes = [1, 16], strides = [1, 1]} : vector<2x16xf32> to vector<1x16xf32>
    %20 = arith.index_cast %c0_i32 : i32 to index
    %c0_15 = arith.constant 0 : index
    %21 = vector.load %arg10[%20, %c0_15] : memref<8x16xf32, #tpu.memory_space<vmem>>, vector<1x16xf32>
    tpu.vector_store %arg10[%20, %c0_15], %19 {strides = array<i32>} : memref<8x16xf32, #tpu.memory_space<vmem>>, vector<1x16xf32>,
    %c1_i32 = arith.constant 1 : i32
    %22 = arith.index_cast %c1_i32 : i32 to index
    %c0_16 = arith.constant 0 : index
    %c0_17 = arith.constant 0 : index
    %23 = vector.load %arg9[%22, %c0_16, %c0_17] : memref<8x2x16xf32, #tpu.memory_space<vmem>>, vector<1x2x16xf32>
    %24 = vector.shape_cast %23 : vector<1x2x16xf32> to vector<2x16xf32>
    %cst_18 = arith.constant dense<0.000000e+00> : vector<2x16xf32>
    %25 = tpu.matmul %18, %1, %cst_18 {dimension_numbers = #tpu.dot_dimension_numbers<[1], [0], [0], [1], [0, 0, 1, 1], [], []>} : vector<2x16xf32>, vector<16x16xf32>, vector<2x16xf32> -> vector<2x16xf32>
    %26 = arith.addf %24, %25 : vector<2x16xf32>
    %27 = math.tanh %26 : vector<2x16xf32>
    %28 = vector.extract_strided_slice %27 {offsets = [1, 0], sizes = [1, 16], strides = [1, 1]} : vector<2x16xf32> to vector<1x16xf32>
    %29 = arith.index_cast %c1_i32 : i32 to index
    %c0_19 = arith.constant 0 : index
    %30 = vector.load %arg10[%29, %c0_19] : memref<8x16xf32, #tpu.memory_space<vmem>>, vector<1x16xf32>
    tpu.vector_store %arg10[%29, %c0_19], %28 {strides = array<i32>} : memref<8x16xf32, #tpu.memory_space<vmem>>, vector<1x16xf32>,
    %c2_i32 = arith.constant 2 : i32
    %31 = arith.index_cast %c2_i32 : i32 to index
    %c0_20 = arith.constant 0 : index
    %c0_21 = arith.constant 0 : index
    %32 = vector.load %arg9[%31, %c0_20, %c0_21] : memref<8x2x16xf32, #tpu.memory_space<vmem>>, vector<1x2x16xf32>
    %33 = vector.shape_cast %32 : vector<1x2x16xf32> to vector<2x16xf32>
    %cst_22 = arith.constant dense<0.000000e+00> : vector<2x16xf32>
    %34 = tpu.matmul %27, %1, %cst_22 {dimension_numbers = #tpu.dot_dimension_numbers<[1], [0], [0], [1], [0, 0, 1, 1], [], []>} : vector<2x16xf32>, vector<16x16xf32>, vector<2x16xf32> -> vector<2x16xf32>
    %35 = arith.addf %33, %34 : vector<2x16xf32>
    %36 = math.tanh %35 : vector<2x16xf32>
    %37 = vector.extract_strided_slice %36 {offsets = [1, 0], sizes = [1, 16], strides = [1, 1]} : vector<2x16xf32> to vector<1x16xf32>
    %38 = arith.index_cast %c2_i32 : i32 to index
    %c0_23 = arith.constant 0 : index
    %39 = vector.load %arg10[%38, %c0_23] : memref<8x16xf32, #tpu.memory_space<vmem>>, vector<1x16xf32>
    tpu.vector_store %arg10[%38, %c0_23], %37 {strides = array<i32>} : memref<8x16xf32, #tpu.memory_space<vmem>>, vector<1x16xf32>,
    %c3_i32 = arith.constant 3 : i32
    %40 = arith.index_cast %c3_i32 : i32 to index
    %c0_24 = arith.constant 0 : index
    %c0_25 = arith.constant 0 : index
    %41 = vector.load %arg9[%40, %c0_24, %c0_25] : memref<8x2x16xf32, #tpu.memory_space<vmem>>, vector<1x2x16xf32>
    %42 = vector.shape_cast %41 : vector<1x2x16xf32> to vector<2x16xf32>
    %cst_26 = arith.constant dense<0.000000e+00> : vector<2x16xf32>
    %43 = tpu.matmul %36, %1, %cst_26 {dimension_numbers = #tpu.dot_dimension_numbers<[1], [0], [0], [1], [0, 0, 1, 1], [], []>} : vector<2x16xf32>, vector<16x16xf32>, vector<2x16xf32> -> vector<2x16xf32>
    %44 = arith.addf %42, %43 : vector<2x16xf32>
    %45 = math.tanh %44 : vector<2x16xf32>
    %46 = vector.extract_strided_slice %45 {offsets = [1, 0], sizes = [1, 16], strides = [1, 1]} : vector<2x16xf32> to vector<1x16xf32>
    %47 = arith.index_cast %c3_i32 : i32 to index
    %c0_27 = arith.constant 0 : index
    %48 = vector.load %arg10[%47, %c0_27] : memref<8x16xf32, #tpu.memory_space<vmem>>, vector<1x16xf32>
    tpu.vector_store %arg10[%47, %c0_27], %46 {strides = array<i32>} : memref<8x16xf32, #tpu.memory_space<vmem>>, vector<1x16xf32>,
    %c4_i32 = arith.constant 4 : i32
    %49 = arith.index_cast %c4_i32 : i32 to index
    %c0_28 = arith.constant 0 : index
    %c0_29 = arith.constant 0 : index
    %50 = vector.load %arg9[%49, %c0_28, %c0_29] : memref<8x2x16xf32, #tpu.memory_space<vmem>>, vector<1x2x16xf32>
    %51 = vector.shape_cast %50 : vector<1x2x16xf32> to vector<2x16xf32>
    %cst_30 = arith.constant dense<0.000000e+00> : vector<2x16xf32>
    %52 = tpu.matmul %45, %1, %cst_30 {dimension_numbers = #tpu.dot_dimension_numbers<[1], [0], [0], [1], [0, 0, 1, 1], [], []>} : vector<2x16xf32>, vector<16x16xf32>, vector<2x16xf32> -> vector<2x16xf32>
    %53 = arith.addf %51, %52 : vector<2x16xf32>
    %54 = math.tanh %53 : vector<2x16xf32>
    %55 = vector.extract_strided_slice %54 {offsets = [1, 0], sizes = [1, 16], strides = [1, 1]} : vector<2x16xf32> to vector<1x16xf32>
    %56 = arith.index_cast %c4_i32 : i32 to index
    %c0_31 = arith.constant 0 : index
    %57 = vector.load %arg10[%56, %c0_31] : memref<8x16xf32, #tpu.memory_space<vmem>>, vector<1x16xf32>
    tpu.vector_store %arg10[%56, %c0_31], %55 {strides = array<i32>} : memref<8x16xf32, #tpu.memory_space<vmem>>, vector<1x16xf32>,
    %c5_i32 = arith.constant 5 : i32
    %58 = arith.index_cast %c5_i32 : i32 to index
    %c0_32 = arith.constant 0 : index
    %c0_33 = arith.constant 0 : index
    %59 = vector.load %arg9[%58, %c0_32, %c0_33] : memref<8x2x16xf32, #tpu.memory_space<vmem>>, vector<1x2x16xf32>
    %60 = vector.shape_cast %59 : vector<1x2x16xf32> to vector<2x16xf32>
    %cst_34 = arith.constant dense<0.000000e+00> : vector<2x16xf32>
    %61 = tpu.matmul %54, %1, %cst_34 {dimension_numbers = #tpu.dot_dimension_numbers<[1], [0], [0], [1], [0, 0, 1, 1], [], []>} : vector<2x16xf32>, vector<16x16xf32>, vector<2x16xf32> -> vector<2x16xf32>
    %62 = arith.addf %60, %61 : vector<2x16xf32>
    %63 = math.tanh %62 : vector<2x16xf32>
    %64 = vector.extract_strided_slice %63 {offsets = [1, 0], sizes = [1, 16], strides = [1, 1]} : vector<2x16xf32> to vector<1x16xf32>
    %65 = arith.index_cast %c5_i32 : i32 to index
    %c0_35 = arith.constant 0 : index
    %66 = vector.load %arg10[%65, %c0_35] : memref<8x16xf32, #tpu.memory_space<vmem>>, vector<1x16xf32>
    tpu.vector_store %arg10[%65, %c0_35], %64 {strides = array<i32>} : memref<8x16xf32, #tpu.memory_space<vmem>>, vector<1x16xf32>,
    %c6_i32 = arith.constant 6 : i32
    %67 = arith.index_cast %c6_i32 : i32 to index
    %c0_36 = arith.constant 0 : index
    %c0_37 = arith.constant 0 : index
    %68 = vector.load %arg9[%67, %c0_36, %c0_37] : memref<8x2x16xf32, #tpu.memory_space<vmem>>, vector<1x2x16xf32>
    %69 = vector.shape_cast %68 : vector<1x2x16xf32> to vector<2x16xf32>
    %cst_38 = arith.constant dense<0.000000e+00> : vector<2x16xf32>
    %70 = tpu.matmul %63, %1, %cst_38 {dimension_numbers = #tpu.dot_dimension_numbers<[1], [0], [0], [1], [0, 0, 1, 1], [], []>} : vector<2x16xf32>, vector<16x16xf32>, vector<2x16xf32> -> vector<2x16xf32>
    %71 = arith.addf %69, %70 : vector<2x16xf32>
    %72 = math.tanh %71 : vector<2x16xf32>
    %73 = vector.extract_strided_slice %72 {offsets = [1, 0], sizes = [1, 16], strides = [1, 1]} : vector<2x16xf32> to vector<1x16xf32>
    %74 = arith.index_cast %c6_i32 : i32 to index
    %c0_39 = arith.constant 0 : index
    %75 = vector.load %arg10[%74, %c0_39] : memref<8x16xf32, #tpu.memory_space<vmem>>, vector<1x16xf32>
    tpu.vector_store %arg10[%74, %c0_39], %73 {strides = array<i32>} : memref<8x16xf32, #tpu.memory_space<vmem>>, vector<1x16xf32>,
    %c7_i32 = arith.constant 7 : i32
    %76 = arith.index_cast %c7_i32 : i32 to index
    %c0_40 = arith.constant 0 : index
    %c0_41 = arith.constant 0 : index
    %77 = vector.load %arg9[%76, %c0_40, %c0_41] : memref<8x2x16xf32, #tpu.memory_space<vmem>>, vector<1x2x16xf32>
    %78 = vector.shape_cast %77 : vector<1x2x16xf32> to vector<2x16xf32>
    %cst_42 = arith.constant dense<0.000000e+00> : vector<2x16xf32>
    %79 = tpu.matmul %72, %1, %cst_42 {dimension_numbers = #tpu.dot_dimension_numbers<[1], [0], [0], [1], [0, 0, 1, 1], [], []>} : vector<2x16xf32>, vector<16x16xf32>, vector<2x16xf32> -> vector<2x16xf32>
    %80 = arith.addf %78, %79 : vector<2x16xf32>
    %81 = math.tanh %80 : vector<2x16xf32>
    %82 = vector.extract_strided_slice %81 {offsets = [1, 0], sizes = [1, 16], strides = [1, 1]} : vector<2x16xf32> to vector<1x16xf32>
    %83 = arith.index_cast %c7_i32 : i32 to index
    %c0_43 = arith.constant 0 : index
    %84 = vector.load %arg10[%83, %c0_43] : memref<8x16xf32, #tpu.memory_space<vmem>>, vector<1x16xf32>
    tpu.vector_store %arg10[%83, %c0_43], %82 {strides = array<i32>} : memref<8x16xf32, #tpu.memory_space<vmem>>, vector<1x16xf32>,
    %c8_i32 = arith.constant 8 : i32
    %c0_44 = arith.constant 0 : index
    %c0_45 = arith.constant 0 : index
    %85 = vector.load %arg8[%c0_44, %c0_45] : memref<2x16xf32, #tpu.memory_space<vmem>>, vector<2x16xf32>
    tpu.vector_store %arg8[%c0_44, %c0_45], %81 {strides = array<i32>} : memref<2x16xf32, #tpu.memory_space<vmem>>, vector<2x16xf32>,
    %c0_46 = arith.constant 0 : index
    %c0_47 = arith.constant 0 : index
    %86 = vector.load %arg10[%c0_46, %c0_47] : memref<8x16xf32, #tpu.memory_space<vmem>>, vector<8x16xf32>
    %c0_48 = arith.constant 0 : index
    %c0_49 = arith.constant 0 : index
    %87 = vector.load %arg5[%c0_48, %c0_49] : memref<16x1xf32, #tpu.memory_space<vmem>>, vector<16x1xf32>
    %cst_50 = arith.constant dense<0.000000e+00> : vector<8x1xf32>
    %88 = tpu.matmul %86, %87, %cst_50 {dimension_numbers = #tpu.dot_dimension_numbers<[1], [0], [0], [1], [0, 0, 1, 1], [], []>} : vector<8x16xf32>, vector<16x1xf32>, vector<8x1xf32> -> vector<8x1xf32>
    %c0_51 = arith.constant 0 : index
    %c0_52 = arith.constant 0 : index
    %89 = vector.load %arg6[%c0_51, %c0_52] : memref<1x1xf32, #tpu.memory_space<vmem>>, vector<1x1xf32>
    %90 = vector.broadcast %89 : vector<1x1xf32> to vector<8x1xf32>
    %91 = arith.addf %88, %90 : vector<8x1xf32>
    %c0_53 = arith.constant 0 : index
    %c0_54 = arith.constant 0 : index
    %92 = vector.load %arg7[%c0_53, %c0_54] : memref<8x1xf32, #tpu.memory_space<vmem>>, vector<8x1xf32>
    tpu.vector_store %arg7[%c0_53, %c0_54], %91 {strides = array<i32>} : memref<8x1xf32, #tpu.memory_space<vmem>>, vector<8x1xf32>,
    return
  }
}

</mosaic_0001>

<llo_original>
// kernel: tpu_custom_call.1
$region0: #{tpu_custom_call.1}
  #allocation0 [shape = 'u32[]', space=smem, size = 0x4, offset = 0x4, fixed_abs, tag = 'smem constant byte address 0x4 - core index']
  #allocation1 [shape = 'u32[144,128]{1,0:T(1,128)}', space=vmem, size = 0x12000, scoped, tag = 'internal scratch']
  #allocation2 [shape = 'f32[8,2,16]{2,1,0:T(2,128)}', space=vmem, size = 0x2000, scoped, tag = 'scratch operand']
  #allocation3 [shape = 'f32[8,16]{1,0:T(8,128)}', space=vmem, size = 0x1000, scoped, tag = 'scratch operand']
  #allocation4 [shape = 'f32[1,1]{1,0:T(1,128)S(1)}', space=vmem, size = 0x200, scoped, tag = 'scoped memory for tpu_custom_call.1']
  %s0 = inlined_call_operand.vmem [shape: f32[8,2,1], index: 0, kind: input, shape index: {}]
  %s1 = inlined_call_operand.vmem [shape: f32[2,16], index: 1, kind: input, shape index: {}]
  %s2 = inlined_call_operand.vmem [shape: f32[1,16], index: 2, kind: input, shape index: {}]
  %s3 = inlined_call_operand.vmem [shape: f32[16,16], index: 3, kind: input, shape index: {}]
  %s4 = inlined_call_operand.vmem [shape: f32[1,16], index: 4, kind: input, shape index: {}]
  %s5 = inlined_call_operand.vmem [shape: f32[16,1], index: 5, kind: input, shape index: {}]
  %s6 = inlined_call_operand.<no memory space> [shape: f32[1,1], index: 6, kind: input, shape index: {}]
  %s7 = inlined_call_operand.vmem [shape: f32[8,1], index: 7, kind: output, shape index: {0}]
  %s8 = inlined_call_operand.hbm [shape: f32[2,16], index: 8, kind: output, shape index: {1}]
  %9 = xla_tuple %s7, %s8
  %s10 = sld [smem:[#allocation0]]
  $region46: #{tpu_custom_call.1} parent=0
    _
  %s12 = ssub.s32 1, %s10
  %s13 = scalar_select 0, %s12, %s10
  %v14 = vstv %s6
  %15 = vst [vmem:[#allocation4] sm:$0x1] %v14
  $region1: #{tpu_custom_call.1} parent=0
    #allocation5 [shape = 'u8[1024]{0}', space=vmem, size = 0x400, scoped, tag = 'output window, operand 1, single buffered']
    #allocation6 [shape = 's32[1]{0}', space=sflag, size = 0x4, scoped, tag = 'scoped memory for tpu_custom_call.1']
    %16 = vsyncpa [#allocation6], 0
    // Predicated region
    $region2: #{tpu_custom_call.1} parent=1 // pred_check
      _
    $region3: #{tpu_custom_call.1} parent=1 // pred_check_branch
      %18 = sbr.rel (0) target = $region5
    $region4: #{tpu_custom_call.1} parent=1 // pred_region
      _
    $region5: #{tpu_custom_call.1} parent=1 // pred_fallthru
      _
    // Predicated region
    $region6: #{tpu_custom_call.1} parent=1 // pred_check
      _
    $region7: #{tpu_custom_call.1} parent=1 // pred_check_branch
      %20 = sbr.rel (0) target = $region9
    $region8: #{tpu_custom_call.1} parent=1 // pred_region
      _
    $region9: #{tpu_custom_call.1} parent=1 // pred_fallthru
      _
    // Predicated region
    $region10: #{tpu_custom_call.1} parent=1 // pred_check
      _
    $region11: #{tpu_custom_call.1} parent=1 // pred_check_branch
      %22 = sbr.rel (0) target = $region13
    $region12: #{tpu_custom_call.1} parent=1 // pred_region
      _
    $region13: #{tpu_custom_call.1} parent=1 // pred_fallthru
      _
    // Predicated region
    $region14: #{tpu_custom_call.1} parent=1 // pred_check
      _
    $region15: #{tpu_custom_call.1} parent=1 // pred_check_branch
      %24 = sbr.rel (0) target = $region17
    $region16: #{tpu_custom_call.1} parent=1 // pred_region
      _
    $region17: #{tpu_custom_call.1} parent=1 // pred_fallthru
      _
    // Predicated region
    $region18: #{tpu_custom_call.1} parent=1 // pred_check
      _
    $region19: #{tpu_custom_call.1} parent=1 // pred_check_branch
      %26 = sbr.rel (0) target = $region21
    $region20: #{tpu_custom_call.1} parent=1 // pred_region
      _
    $region21: #{tpu_custom_call.1} parent=1 // pred_fallthru
      _
    // Predicated region
    $region22: #{tpu_custom_call.1} parent=1 // pred_check
      _
    $region23: #{tpu_custom_call.1} parent=1 // pred_check_branch
      %28 = sbr.rel (0) target = $region25
    $region24: #{tpu_custom_call.1} parent=1 // pred_region
      _
    $region25: #{tpu_custom_call.1} parent=1 // pred_fallthru
      _
    // Predicated region
    $region26: #{tpu_custom_call.1} parent=1 // pred_check
      _
    $region27: #{tpu_custom_call.1} parent=1 // pred_check_branch
      %30 = sbr.rel (0) target = $region29
    $region28: #{tpu_custom_call.1} parent=1 // pred_region
      _
    $region29: #{tpu_custom_call.1} parent=1 // pred_fallthru
      _
    %v31 = vld [vmem:[%s2] sm:$0x1]
    %v32 = vld [vmem:[%s3] sm:$0xff]
    %v33 = vld [vmem:[%s3 + $0x8] sm:$0xff]
    %v34 = vld [vmem:[%s4] sm:$0x1]
    %v35 = vld [vmem:[%s0] sm:$0x3]
    %v36 = vld [vmem:[%s0 + $0x2] sm:$0x3]
    %v37 = vld [vmem:[%s0 + $0x4] sm:$0x3]
    %v38 = vld [vmem:[%s0 + $0x6] sm:$0x3]
    %v39 = vld [vmem:[%s0 + $0x8] sm:$0x3]
    %v40 = vld [vmem:[%s0 + $0xa] sm:$0x3]
    %v41 = vld [vmem:[%s0 + $0xc] sm:$0x3]
    %v42 = vld [vmem:[%s0 + $0xe] sm:$0x3]
    %44 = vset.pattern.permute.xlu0 0
    %45 = vperm.xlu0 %44, %v35
    %v46 = vpop.permute.xlu0 %45
    %49 = vset.pattern.permute.xlu0 0
    %50 = vperm.xlu0 %49, %v36
    %v51 = vpop.permute.xlu0 %50
    %54 = vset.pattern.permute.xlu0 0
    %55 = vperm.xlu0 %54, %v37
    %v56 = vpop.permute.xlu0 %55
    %59 = vset.pattern.permute.xlu0 0
    %60 = vperm.xlu0 %59, %v38
    %v61 = vpop.permute.xlu0 %60
    %64 = vset.pattern.permute.xlu0 0
    %65 = vperm.xlu0 %64, %v39
    %v66 = vpop.permute.xlu0 %65
    %69 = vset.pattern.permute.xlu0 0
    %70 = vperm.xlu0 %69, %v40
    %v71 = vpop.permute.xlu0 %70
    %74 = vset.pattern.permute.xlu0 0
    %75 = vperm.xlu0 %74, %v41
    %v76 = vpop.permute.xlu0 %75
    %79 = vset.pattern.permute.xlu0 0
    %80 = vperm.xlu0 %79, %v42
    %v81 = vpop.permute.xlu0 %80
    %v84 = vlaneseq
    %v85 = vshrl.u32 %v84, 7
    %v86 = vsub.s32 0, %v85
    %v87 = vrot.slane %v31, %v86
    %v89 = vmul.f32 %v46, %v87
    %v90 = vmul.f32 %v51, %v87
    %v91 = vmul.f32 %v56, %v87
    %v92 = vmul.f32 %v61, %v87
    %v93 = vmul.f32 %v66, %v87
    %v94 = vmul.f32 %v71, %v87
    %v95 = vmul.f32 %v76, %v87
    %v96 = vmul.f32 %v81, %v87
    %v98 = vlaneseq
    %v99 = vshrl.u32 %v98, 7
    %v100 = vsub.s32 0, %v99
    %v101 = vrot.slane %v34, %v100
    %v103 = vadd.f32 %v89, %v101
    %v104 = vadd.f32 %v90, %v101
    %v105 = vadd.f32 %v91, %v101
    %v106 = vadd.f32 %v92, %v101
    %v107 = vadd.f32 %v93, %v101
    %v108 = vadd.f32 %v94, %v101
    %v109 = vadd.f32 %v95, %v101
    %v110 = vadd.f32 %v96, %v101
    %vm111 = vcmask 123904
    %112 = vst.msk [vmem:[#allocation2] sm:$0x3] %vm111, %v103
    %113 = vst.msk [vmem:[#allocation2 + $0x2] sm:$0x3] %vm111, %v104
    %114 = vst.msk [vmem:[#allocation2 + $0x4] sm:$0x3] %vm111, %v105
    %115 = vst.msk [vmem:[#allocation2 + $0x6] sm:$0x3] %vm111, %v106
    %116 = vst.msk [vmem:[#allocation2 + $0x8] sm:$0x3] %vm111, %v107
    %117 = vst.msk [vmem:[#allocation2 + $0xa] sm:$0x3] %vm111, %v108
    %118 = vst.msk [vmem:[#allocation2 + $0xc] sm:$0x3] %vm111, %v109
    %119 = vst.msk [vmem:[#allocation2 + $0xe] sm:$0x3] %vm111, %v110
    %v120 = vld [vmem:[%s1] sm:$0x3]
    %v121 = vld [vmem:[#allocation2] sm:$0x3]
    %vm122 = vcmask 130048
    %v124 = vsel %vm122, %v120, 0
    %126 = vmatprep.subr.mxu0 0.0
    %127 = vmatpush1.msra.mxu0 %v32
    %128 = vmatprep.subr.mxu0 0.0
    %129 = vmatpush1.msra.mxu0 %v33
    %130 = vmatprep.subr.mxu0 0.0
    %131 = vmatpush1.msra.mxu0 0.0
    %132 = vmatprep.subr.mxu0 0.0
    %133 = vmatpush1.msra.mxu0 0.0
    %134 = vmatprep.subr.mxu0 0.0
    %135 = vmatpush1.msra.mxu0 0.0
    %136 = vmatprep.subr.mxu0 0.0
    %137 = vmatpush1.msra.mxu0 0.0
    %138 = vmatprep.subr.mxu0 0.0
    %139 = vmatpush1.msra.mxu0 0.0
    %140 = vmatprep.subr.mxu0 0.0
    %141 = vmatpush1.msra.mxu0 0.0
    %142 = vmatprep.subr.mxu0 0.0
    %143 = vmatpush1.msra.mxu0 0.0
    %144 = vmatprep.subr.mxu0 0.0
    %145 = vmatpush1.msra.mxu0 0.0
    %146 = vmatprep.subr.mxu0 0.0
    %147 = vmatpush1.msra.mxu0 0.0
    %148 = vmatprep.subr.mxu0 0.0
    %149 = vmatpush1.msra.mxu0 0.0
    %150 = vmatprep.subr.mxu0 0.0
    %151 = vmatpush1.msra.mxu0 0.0
    %152 = vmatprep.subr.mxu0 0.0
    %153 = vmatpush1.msra.mxu0 0.0
    %154 = vmatprep.subr.mxu0 0.0
    %155 = vmatpush1.msra.mxu0 0.0
    %156 = vmatprep.subr.mxu0 0.0
    %157 = vmatpush1.msra.mxu0 0.0
    %158 = vmatprep.subr.mxu0 0.0
    %159 = vmatpush1.msra.mxu0 0.0
    %160 = vmatprep.subr.mxu0 0.0
    %161 = vmatpush1.msra.mxu0 0.0
    %162 = vmatprep.subr.mxu0 0.0
    %163 = vmatpush1.msra.mxu0 0.0
    %164 = vmatprep.subr.mxu0 0.0
    %165 = vmatpush1.msra.mxu0 0.0
    %166 = vmatprep.subr.mxu0 0.0
    %167 = vmatpush1.msra.mxu0 0.0
    %168 = vmatprep.subr.mxu0 0.0
    %169 = vmatpush1.msra.mxu0 0.0
    %170 = vmatprep.subr.mxu0 0.0
    %171 = vmatpush1.msra.mxu0 0.0
    %172 = vmatprep.subr.mxu0 0.0
    %173 = vmatpush1.msra.mxu0 0.0
    %174 = vmatprep.subr.mxu0 0.0
    %175 = vmatpush1.msra.mxu0 0.0
    %176 = vmatprep.subr.mxu0 0.0
    %177 = vmatpush1.msra.mxu0 0.0
    %178 = vmatprep.subr.mxu0 0.0
    %179 = vmatpush1.msra.mxu0 0.0
    %180 = vmatprep.subr.mxu0 0.0
    %181 = vmatpush1.msra.mxu0 0.0
    %182 = vmatprep.subr.mxu0 0.0
    %183 = vmatpush1.msra.mxu0 0.0
    %184 = vmatprep.subr.mxu0 0.0
    %185 = vmatpush1.msra.mxu0 0.0
    %186 = vmatprep.subr.mxu0 0.0
    %187 = vmatpush1.msra.mxu0 0.0
    %188 = vmatprep.subr.mxu0 0.0
    %189 = vmatpush1.msra.mxu0 0.0
    %190 = vmatprep.mubr.f32.mxu0 0.0
    %191 = vmatmul.mubr.f32.gmra.mrb[0].mxu0 %v124
    %v192 = vpop.f32.mrb[0].mxu0
    %v193 = vadd.f32 0.0, %v192
    %v194 = vpop.f32.mrb[0].mxu0
    %195 = vdwg.mxu0
    %v196 = vadd.f32 %v121, %v193
    %v197 = vtanh.pop %v196
    %vm198 = vcmask 123905
    %199 = vst.msk [vmem:[#allocation3 - $0x1] sm:$0x2] %vm198, %v197
    %s200 = scalar_lea.vmem [#allocation2], 2
    %v201 = vld [vmem:[%s200] sm:$0x3]
    %v203 = vsel %vm122, %v197, 0
    %205 = vmatprep.subr.mxu0 0.0
    %206 = vmatpush1.msra.mxu0 %v32
    %207 = vmatprep.subr.mxu0 0.0
    %208 = vmatpush1.msra.mxu0 %v33
    %209 = vmatprep.subr.mxu0 0.0
    %210 = vmatpush1.msra.mxu0 0.0
    %211 = vmatprep.subr.mxu0 0.0
    %212 = vmatpush1.msra.mxu0 0.0
    %213 = vmatprep.subr.mxu0 0.0
    %214 = vmatpush1.msra.mxu0 0.0
    %215 = vmatprep.subr.mxu0 0.0
    %216 = vmatpush1.msra.mxu0 0.0
    %217 = vmatprep.subr.mxu0 0.0
    %218 = vmatpush1.msra.mxu0 0.0
    %219 = vmatprep.subr.mxu0 0.0
    %220 = vmatpush1.msra.mxu0 0.0
    %221 = vmatprep.subr.mxu0 0.0
    %222 = vmatpush1.msra.mxu0 0.0
    %223 = vmatprep.subr.mxu0 0.0
    %224 = vmatpush1.msra.mxu0 0.0
    %225 = vmatprep.subr.mxu0 0.0
    %226 = vmatpush1.msra.mxu0 0.0
    %227 = vmatprep.subr.mxu0 0.0
    %228 = vmatpush1.msra.mxu0 0.0
    %229 = vmatprep.subr.mxu0 0.0
    %230 = vmatpush1.msra.mxu0 0.0
    %231 = vmatprep.subr.mxu0 0.0
    %232 = vmatpush1.msra.mxu0 0.0
    %233 = vmatprep.subr.mxu0 0.0
    %234 = vmatpush1.msra.mxu0 0.0
    %235 = vmatprep.subr.mxu0 0.0
    %236 = vmatpush1.msra.mxu0 0.0
    %237 = vmatprep.subr.mxu0 0.0
    %238 = vmatpush1.msra.mxu0 0.0
    %239 = vmatprep.subr.mxu0 0.0
    %240 = vmatpush1.msra.mxu0 0.0
    %241 = vmatprep.subr.mxu0 0.0
    %242 = vmatpush1.msra.mxu0 0.0
    %243 = vmatprep.subr.mxu0 0.0
    %244 = vmatpush1.msra.mxu0 0.0
    %245 = vmatprep.subr.mxu0 0.0
    %246 = vmatpush1.msra.mxu0 0.0
    %247 = vmatprep.subr.mxu0 0.0
    %248 = vmatpush1.msra.mxu0 0.0
    %249 = vmatprep.subr.mxu0 0.0
    %250 = vmatpush1.msra.mxu0 0.0
    %251 = vmatprep.subr.mxu0 0.0
    %252 = vmatpush1.msra.mxu0 0.0
    %253 = vmatprep.subr.mxu0 0.0
    %254 = vmatpush1.msra.mxu0 0.0
    %255 = vmatprep.subr.mxu0 0.0
    %256 = vmatpush1.msra.mxu0 0.0
    %257 = vmatprep.subr.mxu0 0.0
    %258 = vmatpush1.msra.mxu0 0.0
    %259 = vmatprep.subr.mxu0 0.0
    %260 = vmatpush1.msra.mxu0 0.0
    %261 = vmatprep.subr.mxu0 0.0
    %262 = vmatpush1.msra.mxu0 0.0
    %263 = vmatprep.subr.mxu0 0.0
    %264 = vmatpush1.msra.mxu0 0.0
    %265 = vmatprep.subr.mxu0 0.0
    %266 = vmatpush1.msra.mxu0 0.0
    %267 = vmatprep.subr.mxu0 0.0
    %268 = vmatpush1.msra.mxu0 0.0
    %269 = vmatprep.mubr.f32.mxu0 0.0
    %270 = vmatmul.mubr.f32.gmra.mrb[0].mxu0 %v203
    %v271 = vpop.f32.mrb[0].mxu0
    %v272 = vadd.f32 0.0, %v271
    %v273 = vpop.f32.mrb[0].mxu0
    %274 = vdwg.mxu0
    %v275 = vadd.f32 %v201, %v272
    %v276 = vtanh.pop %v275
    %277 = vst.msk [vmem:[#allocation3] sm:$0x2] %vm198, %v276
    %s278 = scalar_lea.vmem [#allocation2], 4
    %v279 = vld [vmem:[%s278] sm:$0x3]
    %v281 = vsel %vm122, %v276, 0
    %283 = vmatprep.subr.mxu0 0.0
    %284 = vmatpush1.msra.mxu0 %v32
    %285 = vmatprep.subr.mxu0 0.0
    %286 = vmatpush1.msra.mxu0 %v33
    %287 = vmatprep.subr.mxu0 0.0
    %288 = vmatpush1.msra.mxu0 0.0
    %289 = vmatprep.subr.mxu0 0.0
    %290 = vmatpush1.msra.mxu0 0.0
    %291 = vmatprep.subr.mxu0 0.0
    %292 = vmatpush1.msra.mxu0 0.0
    %293 = vmatprep.subr.mxu0 0.0
    %294 = vmatpush1.msra.mxu0 0.0
    %295 = vmatprep.subr.mxu0 0.0
    %296 = vmatpush1.msra.mxu0 0.0
    %297 = vmatprep.subr.mxu0 0.0
    %298 = vmatpush1.msra.mxu0 0.0
    %299 = vmatprep.subr.mxu0 0.0
    %300 = vmatpush1.msra.mxu0 0.0
    %301 = vmatprep.subr.mxu0 0.0
    %302 = vmatpush1.msra.mxu0 0.0
    %303 = vmatprep.subr.mxu0 0.0
    %304 = vmatpush1.msra.mxu0 0.0
    %305 = vmatprep.subr.mxu0 0.0
    %306 = vmatpush1.msra.mxu0 0.0
    %307 = vmatprep.subr.mxu0 0.0
    %308 = vmatpush1.msra.mxu0 0.0
    %309 = vmatprep.subr.mxu0 0.0
    %310 = vmatpush1.msra.mxu0 0.0
    %311 = vmatprep.subr.mxu0 0.0
    %312 = vmatpush1.msra.mxu0 0.0
    %313 = vmatprep.subr.mxu0 0.0
    %314 = vmatpush1.msra.mxu0 0.0
    %315 = vmatprep.subr.mxu0 0.0
    %316 = vmatpush1.msra.mxu0 0.0
    %317 = vmatprep.subr.mxu0 0.0
    %318 = vmatpush1.msra.mxu0 0.0
    %319 = vmatprep.subr.mxu0 0.0
    %320 = vmatpush1.msra.mxu0 0.0
    %321 = vmatprep.subr.mxu0 0.0
    %322 = vmatpush1.msra.mxu0 0.0
    %323 = vmatprep.subr.mxu0 0.0
    %324 = vmatpush1.msra.mxu0 0.0
    %325 = vmatprep.subr.mxu0 0.0
    %326 = vmatpush1.msra.mxu0 0.0
    %327 = vmatprep.subr.mxu0 0.0
    %328 = vmatpush1.msra.mxu0 0.0
    %329 = vmatprep.subr.mxu0 0.0
    %330 = vmatpush1.msra.mxu0 0.0
    %331 = vmatprep.subr.mxu0 0.0
    %332 = vmatpush1.msra.mxu0 0.0
    %333 = vmatprep.subr.mxu0 0.0
    %334 = vmatpush1.msra.mxu0 0.0
    %335 = vmatprep.subr.mxu0 0.0
    %336 = vmatpush1.msra.mxu0 0.0
    %337 = vmatprep.subr.mxu0 0.0
    %338 = vmatpush1.msra.mxu0 0.0
    %339 = vmatprep.subr.mxu0 0.0
    %340 = vmatpush1.msra.mxu0 0.0
    %341 = vmatprep.subr.mxu0 0.0
    %342 = vmatpush1.msra.mxu0 0.0
    %343 = vmatprep.subr.mxu0 0.0
    %344 = vmatpush1.msra.mxu0 0.0
    %345 = vmatprep.subr.mxu0 0.0
    %346 = vmatpush1.msra.mxu0 0.0
    %347 = vmatprep.mubr.f32.mxu0 0.0
    %348 = vmatmul.mubr.f32.gmra.mrb[0].mxu0 %v281
    %v349 = vpop.f32.mrb[0].mxu0
    %v350 = vadd.f32 0.0, %v349
    %v351 = vpop.f32.mrb[0].mxu0
    %352 = vdwg.mxu0
    %v353 = vadd.f32 %v279, %v350
    %v354 = vtanh.pop %v353
    %355 = vst.msk [vmem:[#allocation3 + $0x1] sm:$0x2] %vm198, %v354
    %s356 = scalar_lea.vmem [#allocation2], 6
    %v357 = vld [vmem:[%s356] sm:$0x3]
    %v359 = vsel %vm122, %v354, 0
    %361 = vmatprep.subr.mxu0 0.0
    %362 = vmatpush1.msra.mxu0 %v32
    %363 = vmatprep.subr.mxu0 0.0
    %364 = vmatpush1.msra.mxu0 %v33
    %365 = vmatprep.subr.mxu0 0.0
    %366 = vmatpush1.msra.mxu0 0.0
    %367 = vmatprep.subr.mxu0 0.0
    %368 = vmatpush1.msra.mxu0 0.0
    %369 = vmatprep.subr.mxu0 0.0
    %370 = vmatpush1.msra.mxu0 0.0
    %371 = vmatprep.subr.mxu0 0.0
    %372 = vmatpush1.msra.mxu0 0.0
    %373 = vmatprep.subr.mxu0 0.0
    %374 = vmatpush1.msra.mxu0 0.0
    %375 = vmatprep.subr.mxu0 0.0
    %376 = vmatpush1.msra.mxu0 0.0
    %377 = vmatprep.subr.mxu0 0.0
    %378 = vmatpush1.msra.mxu0 0.0
    %379 = vmatprep.subr.mxu0 0.0
    %380 = vmatpush1.msra.mxu0 0.0
    %381 = vmatprep.subr.mxu0 0.0
    %382 = vmatpush1.msra.mxu0 0.0
    %383 = vmatprep.subr.mxu0 0.0
    %384 = vmatpush1.msra.mxu0 0.0
    %385 = vmatprep.subr.mxu0 0.0
    %386 = vmatpush1.msra.mxu0 0.0
    %387 = vmatprep.subr.mxu0 0.0
    %388 = vmatpush1.msra.mxu0 0.0
    %389 = vmatprep.subr.mxu0 0.0
    %390 = vmatpush1.msra.mxu0 0.0
    %391 = vmatprep.subr.mxu0 0.0
    %392 = vmatpush1.msra.mxu0 0.0
    %393 = vmatprep.subr.mxu0 0.0
    %394 = vmatpush1.msra.mxu0 0.0
    %395 = vmatprep.subr.mxu0 0.0
    %396 = vmatpush1.msra.mxu0 0.0
    %397 = vmatprep.subr.mxu0 0.0
    %398 = vmatpush1.msra.mxu0 0.0
    %399 = vmatprep.subr.mxu0 0.0
    %400 = vmatpush1.msra.mxu0 0.0
    %401 = vmatprep.subr.mxu0 0.0
    %402 = vmatpush1.msra.mxu0 0.0
    %403 = vmatprep.subr.mxu0 0.0
    %404 = vmatpush1.msra.mxu0 0.0
    %405 = vmatprep.subr.mxu0 0.0
    %406 = vmatpush1.msra.mxu0 0.0
    %407 = vmatprep.subr.mxu0 0.0
    %408 = vmatpush1.msra.mxu0 0.0
    %409 = vmatprep.subr.mxu0 0.0
    %410 = vmatpush1.msra.mxu0 0.0
    %411 = vmatprep.subr.mxu0 0.0
    %412 = vmatpush1.msra.mxu0 0.0
    %413 = vmatprep.subr.mxu0 0.0
    %414 = vmatpush1.msra.mxu0 0.0
    %415 = vmatprep.subr.mxu0 0.0
    %416 = vmatpush1.msra.mxu0 0.0
    %417 = vmatprep.subr.mxu0 0.0
    %418 = vmatpush1.msra.mxu0 0.0
    %419 = vmatprep.subr.mxu0 0.0
    %420 = vmatpush1.msra.mxu0 0.0
    %421 = vmatprep.subr.mxu0 0.0
    %422 = vmatpush1.msra.mxu0 0.0
    %423 = vmatprep.subr.mxu0 0.0
    %424 = vmatpush1.msra.mxu0 0.0
    %425 = vmatprep.mubr.f32.mxu0 0.0
    %426 = vmatmul.mubr.f32.gmra.mrb[0].mxu0 %v359
    %v427 = vpop.f32.mrb[0].mxu0
    %v428 = vadd.f32 0.0, %v427
    %v429 = vpop.f32.mrb[0].mxu0
    %430 = vdwg.mxu0
    %v431 = vadd.f32 %v357, %v428
    %v432 = vtanh.pop %v431
    %433 = vst.msk [vmem:[#allocation3 + $0x2] sm:$0x2] %vm198, %v432
    %s434 = scalar_lea.vmem [#allocation2], 8
    %v435 = vld [vmem:[%s434] sm:$0x3]
    %v437 = vsel %vm122, %v432, 0
    %439 = vmatprep.subr.mxu0 0.0
    %440 = vmatpush1.msra.mxu0 %v32
    %441 = vmatprep.subr.mxu0 0.0
    %442 = vmatpush1.msra.mxu0 %v33
    %443 = vmatprep.subr.mxu0 0.0
    %444 = vmatpush1.msra.mxu0 0.0
    %445 = vmatprep.subr.mxu0 0.0
    %446 = vmatpush1.msra.mxu0 0.0
    %447 = vmatprep.subr.mxu0 0.0
    %448 = vmatpush1.msra.mxu0 0.0
    %449 = vmatprep.subr.mxu0 0.0
    %450 = vmatpush1.msra.mxu0 0.0
    %451 = vmatprep.subr.mxu0 0.0
    %452 = vmatpush1.msra.mxu0 0.0
    %453 = vmatprep.subr.mxu0 0.0
    %454 = vmatpush1.msra.mxu0 0.0
    %455 = vmatprep.subr.mxu0 0.0
    %456 = vmatpush1.msra.mxu0 0.0
    %457 = vmatprep.subr.mxu0 0.0
    %458 = vmatpush1.msra.mxu0 0.0
    %459 = vmatprep.subr.mxu0 0.0
    %460 = vmatpush1.msra.mxu0 0.0
    %461 = vmatprep.subr.mxu0 0.0
    %462 = vmatpush1.msra.mxu0 0.0
    %463 = vmatprep.subr.mxu0 0.0
    %464 = vmatpush1.msra.mxu0 0.0
    %465 = vmatprep.subr.mxu0 0.0
    %466 = vmatpush1.msra.mxu0 0.0
    %467 = vmatprep.subr.mxu0 0.0
    %468 = vmatpush1.msra.mxu0 0.0
    %469 = vmatprep.subr.mxu0 0.0
    %470 = vmatpush1.msra.mxu0 0.0
    %471 = vmatprep.subr.mxu0 0.0
    %472 = vmatpush1.msra.mxu0 0.0
    %473 = vmatprep.subr.mxu0 0.0
    %474 = vmatpush1.msra.mxu0 0.0
    %475 = vmatprep.subr.mxu0 0.0
    %476 = vmatpush1.msra.mxu0 0.0
    %477 = vmatprep.subr.mxu0 0.0
    %478 = vmatpush1.msra.mxu0 0.0
    %479 = vmatprep.subr.mxu0 0.0
    %480 = vmatpush1.msra.mxu0 0.0
    %481 = vmatprep.subr.mxu0 0.0
    %482 = vmatpush1.msra.mxu0 0.0
    %483 = vmatprep.subr.mxu0 0.0
    %484 = vmatpush1.msra.mxu0 0.0
    %485 = vmatprep.subr.mxu0 0.0
    %486 = vmatpush1.msra.mxu0 0.0
    %487 = vmatprep.subr.mxu0 0.0
    %488 = vmatpush1.msra.mxu0 0.0
    %489 = vmatprep.subr.mxu0 0.0
    %490 = vmatpush1.msra.mxu0 0.0
    %491 = vmatprep.subr.mxu0 0.0
    %492 = vmatpush1.msra.mxu0 0.0
    %493 = vmatprep.subr.mxu0 0.0
    %494 = vmatpush1.msra.mxu0 0.0
    %495 = vmatprep.subr.mxu0 0.0
    %496 = vmatpush1.msra.mxu0 0.0
    %497 = vmatprep.subr.mxu0 0.0
    %498 = vmatpush1.msra.mxu0 0.0
    %499 = vmatprep.subr.mxu0 0.0
    %500 = vmatpush1.msra.mxu0 0.0
    %501 = vmatprep.subr.mxu0 0.0
    %502 = vmatpush1.msra.mxu0 0.0
    %503 = vmatprep.mubr.f32.mxu0 0.0
    %504 = vmatmul.mubr.f32.gmra.mrb[0].mxu0 %v437
    %v505 = vpop.f32.mrb[0].mxu0
    %v506 = vadd.f32 0.0, %v505
    %v507 = vpop.f32.mrb[0].mxu0
    %508 = vdwg.mxu0
    %v509 = vadd.f32 %v435, %v506
    %v510 = vtanh.pop %v509
    %511 = vst.msk [vmem:[#allocation3 + $0x3] sm:$0x2] %vm198, %v510
    %s512 = scalar_lea.vmem [#allocation2], 10
    %v513 = vld [vmem:[%s512] sm:$0x3]
    %v515 = vsel %vm122, %v510, 0
    %517 = vmatprep.subr.mxu0 0.0
    %518 = vmatpush1.msra.mxu0 %v32
    %519 = vmatprep.subr.mxu0 0.0
    %520 = vmatpush1.msra.mxu0 %v33
    %521 = vmatprep.subr.mxu0 0.0
    %522 = vmatpush1.msra.mxu0 0.0
    %523 = vmatprep.subr.mxu0 0.0
    %524 = vmatpush1.msra.mxu0 0.0
    %525 = vmatprep.subr.mxu0 0.0
    %526 = vmatpush1.msra.mxu0 0.0
    %527 = vmatprep.subr.mxu0 0.0
    %528 = vmatpush1.msra.mxu0 0.0
    %529 = vmatprep.subr.mxu0 0.0
    %530 = vmatpush1.msra.mxu0 0.0
    %531 = vmatprep.subr.mxu0 0.0
    %532 = vmatpush1.msra.mxu0 0.0
    %533 = vmatprep.subr.mxu0 0.0
    %534 = vmatpush1.msra.mxu0 0.0
    %535 = vmatprep.subr.mxu0 0.0
    %536 = vmatpush1.msra.mxu0 0.0
    %537 = vmatprep.subr.mxu0 0.0
    %538 = vmatpush1.msra.mxu0 0.0
    %539 = vmatprep.subr.mxu0 0.0
    %540 = vmatpush1.msra.mxu0 0.0
    %541 = vmatprep.subr.mxu0 0.0
    %542 = vmatpush1.msra.mxu0 0.0
    %543 = vmatprep.subr.mxu0 0.0
    %544 = vmatpush1.msra.mxu0 0.0
    %545 = vmatprep.subr.mxu0 0.0
    %546 = vmatpush1.msra.mxu0 0.0
    %547 = vmatprep.subr.mxu0 0.0
    %548 = vmatpush1.msra.mxu0 0.0
    %549 = vmatprep.subr.mxu0 0.0
    %550 = vmatpush1.msra.mxu0 0.0
    %551 = vmatprep.subr.mxu0 0.0
    %552 = vmatpush1.msra.mxu0 0.0
    %553 = vmatprep.subr.mxu0 0.0
    %554 = vmatpush1.msra.mxu0 0.0
    %555 = vmatprep.subr.mxu0 0.0
    %556 = vmatpush1.msra.mxu0 0.0
    %557 = vmatprep.subr.mxu0 0.0
    %558 = vmatpush1.msra.mxu0 0.0
    %559 = vmatprep.subr.mxu0 0.0
    %560 = vmatpush1.msra.mxu0 0.0
    %561 = vmatprep.subr.mxu0 0.0
    %562 = vmatpush1.msra.mxu0 0.0
    %563 = vmatprep.subr.mxu0 0.0
    %564 = vmatpush1.msra.mxu0 0.0
    %565 = vmatprep.subr.mxu0 0.0
    %566 = vmatpush1.msra.mxu0 0.0
    %567 = vmatprep.subr.mxu0 0.0
    %568 = vmatpush1.msra.mxu0 0.0
    %569 = vmatprep.subr.mxu0 0.0
    %570 = vmatpush1.msra.mxu0 0.0
    %571 = vmatprep.subr.mxu0 0.0
    %572 = vmatpush1.msra.mxu0 0.0
    %573 = vmatprep.subr.mxu0 0.0
    %574 = vmatpush1.msra.mxu0 0.0
    %575 = vmatprep.subr.mxu0 0.0
    %576 = vmatpush1.msra.mxu0 0.0
    %577 = vmatprep.subr.mxu0 0.0
    %578 = vmatpush1.msra.mxu0 0.0
    %579 = vmatprep.subr.mxu0 0.0
    %580 = vmatpush1.msra.mxu0 0.0
    %581 = vmatprep.mubr.f32.mxu0 0.0
    %582 = vmatmul.mubr.f32.gmra.mrb[0].mxu0 %v515
    %v583 = vpop.f32.mrb[0].mxu0
    %v584 = vadd.f32 0.0, %v583
    %v585 = vpop.f32.mrb[0].mxu0
    %586 = vdwg.mxu0
    %v587 = vadd.f32 %v513, %v584
    %v588 = vtanh.pop %v587
    %589 = vst.msk [vmem:[#allocation3 + $0x4] sm:$0x2] %vm198, %v588
    %s590 = scalar_lea.vmem [#allocation2], 12
    %v591 = vld [vmem:[%s590] sm:$0x3]
    %v593 = vsel %vm122, %v588, 0
    %595 = vmatprep.subr.mxu0 0.0
    %596 = vmatpush1.msra.mxu0 %v32
    %597 = vmatprep.subr.mxu0 0.0
    %598 = vmatpush1.msra.mxu0 %v33
    %599 = vmatprep.subr.mxu0 0.0
    %600 = vmatpush1.msra.mxu0 0.0
    %601 = vmatprep.subr.mxu0 0.0
    %602 = vmatpush1.msra.mxu0 0.0
    %603 = vmatprep.subr.mxu0 0.0
    %604 = vmatpush1.msra.mxu0 0.0
    %605 = vmatprep.subr.mxu0 0.0
    %606 = vmatpush1.msra.mxu0 0.0
    %607 = vmatprep.subr.mxu0 0.0
    %608 = vmatpush1.msra.mxu0 0.0
    %609 = vmatprep.subr.mxu0 0.0
    %610 = vmatpush1.msra.mxu0 0.0
    %611 = vmatprep.subr.mxu0 0.0
    %612 = vmatpush1.msra.mxu0 0.0
    %613 = vmatprep.subr.mxu0 0.0
    %614 = vmatpush1.msra.mxu0 0.0
    %615 = vmatprep.subr.mxu0 0.0
    %616 = vmatpush1.msra.mxu0 0.0
    %617 = vmatprep.subr.mxu0 0.0
    %618 = vmatpush1.msra.mxu0 0.0
    %619 = vmatprep.subr.mxu0 0.0
    %620 = vmatpush1.msra.mxu0 0.0
    %621 = vmatprep.subr.mxu0 0.0
    %622 = vmatpush1.msra.mxu0 0.0
    %623 = vmatprep.subr.mxu0 0.0
    %624 = vmatpush1.msra.mxu0 0.0
    %625 = vmatprep.subr.mxu0 0.0
    %626 = vmatpush1.msra.mxu0 0.0
    %627 = vmatprep.subr.mxu0 0.0
    %628 = vmatpush1.msra.mxu0 0.0
    %629 = vmatprep.subr.mxu0 0.0
    %630 = vmatpush1.msra.mxu0 0.0
    %631 = vmatprep.subr.mxu0 0.0
    %632 = vmatpush1.msra.mxu0 0.0
    %633 = vmatprep.subr.mxu0 0.0
    %634 = vmatpush1.msra.mxu0 0.0
    %635 = vmatprep.subr.mxu0 0.0
    %636 = vmatpush1.msra.mxu0 0.0
    %637 = vmatprep.subr.mxu0 0.0
    %638 = vmatpush1.msra.mxu0 0.0
    %639 = vmatprep.subr.mxu0 0.0
    %640 = vmatpush1.msra.mxu0 0.0
    %641 = vmatprep.subr.mxu0 0.0
    %642 = vmatpush1.msra.mxu0 0.0
    %643 = vmatprep.subr.mxu0 0.0
    %644 = vmatpush1.msra.mxu0 0.0
    %645 = vmatprep.subr.mxu0 0.0
    %646 = vmatpush1.msra.mxu0 0.0
    %647 = vmatprep.subr.mxu0 0.0
    %648 = vmatpush1.msra.mxu0 0.0
    %649 = vmatprep.subr.mxu0 0.0
    %650 = vmatpush1.msra.mxu0 0.0
    %651 = vmatprep.subr.mxu0 0.0
    %652 = vmatpush1.msra.mxu0 0.0
    %653 = vmatprep.subr.mxu0 0.0
    %654 = vmatpush1.msra.mxu0 0.0
    %655 = vmatprep.subr.mxu0 0.0
    %656 = vmatpush1.msra.mxu0 0.0
    %657 = vmatprep.subr.mxu0 0.0
    %658 = vmatpush1.msra.mxu0 0.0
    %659 = vmatprep.mubr.f32.mxu0 0.0
    %660 = vmatmul.mubr.f32.gmra.mrb[0].mxu0 %v593
    %v661 = vpop.f32.mrb[0].mxu0
    %v662 = vadd.f32 0.0, %v661
    %v663 = vpop.f32.mrb[0].mxu0
    %664 = vdwg.mxu0
    %v665 = vadd.f32 %v591, %v662
    %v666 = vtanh.pop %v665
    %667 = vst.msk [vmem:[#allocation3 + $0x5] sm:$0x2] %vm198, %v666
    %s668 = scalar_lea.vmem [#allocation2], 14
    %v669 = vld [vmem:[%s668] sm:$0x3]
    %v671 = vsel %vm122, %v666, 0
    %673 = vmatprep.subr.mxu0 0.0
    %674 = vmatpush1.msra.mxu0 %v32
    %675 = vmatprep.subr.mxu0 0.0
    %676 = vmatpush1.msra.mxu0 %v33
    %677 = vmatprep.subr.mxu0 0.0
    %678 = vmatpush1.msra.mxu0 0.0
    %679 = vmatprep.subr.mxu0 0.0
    %680 = vmatpush1.msra.mxu0 0.0
    %681 = vmatprep.subr.mxu0 0.0
    %682 = vmatpush1.msra.mxu0 0.0
    %683 = vmatprep.subr.mxu0 0.0
    %684 = vmatpush1.msra.mxu0 0.0
    %685 = vmatprep.subr.mxu0 0.0
    %686 = vmatpush1.msra.mxu0 0.0
    %687 = vmatprep.subr.mxu0 0.0
    %688 = vmatpush1.msra.mxu0 0.0
    %689 = vmatprep.subr.mxu0 0.0
    %690 = vmatpush1.msra.mxu0 0.0
    %691 = vmatprep.subr.mxu0 0.0
    %692 = vmatpush1.msra.mxu0 0.0
    %693 = vmatprep.subr.mxu0 0.0
    %694 = vmatpush1.msra.mxu0 0.0
    %695 = vmatprep.subr.mxu0 0.0
    %696 = vmatpush1.msra.mxu0 0.0
    %697 = vmatprep.subr.mxu0 0.0
    %698 = vmatpush1.msra.mxu0 0.0
    %699 = vmatprep.subr.mxu0 0.0
    %700 = vmatpush1.msra.mxu0 0.0
    %701 = vmatprep.subr.mxu0 0.0
    %702 = vmatpush1.msra.mxu0 0.0
    %703 = vmatprep.subr.mxu0 0.0
    %704 = vmatpush1.msra.mxu0 0.0
    %705 = vmatprep.subr.mxu0 0.0
    %706 = vmatpush1.msra.mxu0 0.0
    %707 = vmatprep.subr.mxu0 0.0
    %708 = vmatpush1.msra.mxu0 0.0
    %709 = vmatprep.subr.mxu0 0.0
    %710 = vmatpush1.msra.mxu0 0.0
    %711 = vmatprep.subr.mxu0 0.0
    %712 = vmatpush1.msra.mxu0 0.0
    %713 = vmatprep.subr.mxu0 0.0
    %714 = vmatpush1.msra.mxu0 0.0
    %715 = vmatprep.subr.mxu0 0.0
    %716 = vmatpush1.msra.mxu0 0.0
    %717 = vmatprep.subr.mxu0 0.0
    %718 = vmatpush1.msra.mxu0 0.0
    %719 = vmatprep.subr.mxu0 0.0
    %720 = vmatpush1.msra.mxu0 0.0
    %721 = vmatprep.subr.mxu0 0.0
    %722 = vmatpush1.msra.mxu0 0.0
    %723 = vmatprep.subr.mxu0 0.0
    %724 = vmatpush1.msra.mxu0 0.0
    %725 = vmatprep.subr.mxu0 0.0
    %726 = vmatpush1.msra.mxu0 0.0
    %727 = vmatprep.subr.mxu0 0.0
    %728 = vmatpush1.msra.mxu0 0.0
    %729 = vmatprep.subr.mxu0 0.0
    %730 = vmatpush1.msra.mxu0 0.0
    %731 = vmatprep.subr.mxu0 0.0
    %732 = vmatpush1.msra.mxu0 0.0
    %733 = vmatprep.subr.mxu0 0.0
    %734 = vmatpush1.msra.mxu0 0.0
    %735 = vmatprep.subr.mxu0 0.0
    %736 = vmatpush1.msra.mxu0 0.0
    %737 = vmatprep.mubr.f32.mxu0 0.0
    %738 = vmatmul.mubr.f32.gmra.mrb[0].mxu0 %v671
    %v739 = vpop.f32.mrb[0].mxu0
    %v740 = vadd.f32 0.0, %v739
    %v741 = vpop.f32.mrb[0].mxu0
    %742 = vdwg.mxu0
    %v743 = vadd.f32 %v669, %v740
    %v744 = vtanh.pop %v743
    %745 = vst.msk [vmem:[#allocation3 + $0x6] sm:$0x2] %vm198, %v744
    %746 = vst.msk [vmem:[#allocation5] sm:$0x3] %vm111, %v744
    %v747 = vld [vmem:[#allocation3] sm:$0xff]
    %v748 = vld [vmem:[%s5] sm:$0xff]
    %v749 = vld [vmem:[%s5 + $0x8] sm:$0xff]
    %v750 = vld [vmem:[#allocation4] sm:$0x1]
    %v752 = vlaneseq
    %v753 = vshrl.u32 %v752, 7
    %v754 = vsub.s32 0, %v753
    %v755 = vrot.slane %v750, %v754
    %v758 = vsel %vm122, %v747, 0
    %760 = vmatprep.subr.mxu0 0.0
    %761 = vmatpush1.msra.mxu0 %v748
    %762 = vmatprep.subr.mxu0 0.0
    %763 = vmatpush1.msra.mxu0 %v749
    %764 = vmatprep.subr.mxu0 0.0
    %765 = vmatpush1.msra.mxu0 0.0
    %766 = vmatprep.subr.mxu0 0.0
    %767 = vmatpush1.msra.mxu0 0.0
    %768 = vmatprep.subr.mxu0 0.0
    %769 = vmatpush1.msra.mxu0 0.0
    %770 = vmatprep.subr.mxu0 0.0
    %771 = vmatpush1.msra.mxu0 0.0
    %772 = vmatprep.subr.mxu0 0.0
    %773 = vmatpush1.msra.mxu0 0.0
    %774 = vmatprep.subr.mxu0 0.0
    %775 = vmatpush1.msra.mxu0 0.0
    %776 = vmatprep.subr.mxu0 0.0
    %777 = vmatpush1.msra.mxu0 0.0
    %778 = vmatprep.subr.mxu0 0.0
    %779 = vmatpush1.msra.mxu0 0.0
    %780 = vmatprep.subr.mxu0 0.0
    %781 = vmatpush1.msra.mxu0 0.0
    %782 = vmatprep.subr.mxu0 0.0
    %783 = vmatpush1.msra.mxu0 0.0
    %784 = vmatprep.subr.mxu0 0.0
    %785 = vmatpush1.msra.mxu0 0.0
    %786 = vmatprep.subr.mxu0 0.0
    %787 = vmatpush1.msra.mxu0 0.0
    %788 = vmatprep.subr.mxu0 0.0
    %789 = vmatpush1.msra.mxu0 0.0
    %790 = vmatprep.subr.mxu0 0.0
    %791 = vmatpush1.msra.mxu0 0.0
    %792 = vmatprep.subr.mxu0 0.0
    %793 = vmatpush1.msra.mxu0 0.0
    %794 = vmatprep.subr.mxu0 0.0
    %795 = vmatpush1.msra.mxu0 0.0
    %796 = vmatprep.subr.mxu0 0.0
    %797 = vmatpush1.msra.mxu0 0.0
    %798 = vmatprep.subr.mxu0 0.0
    %799 = vmatpush1.msra.mxu0 0.0
    %800 = vmatprep.subr.mxu0 0.0
    %801 = vmatpush1.msra.mxu0 0.0
    %802 = vmatprep.subr.mxu0 0.0
    %803 = vmatpush1.msra.mxu0 0.0
    %804 = vmatprep.subr.mxu0 0.0
    %805 = vmatpush1.msra.mxu0 0.0
    %806 = vmatprep.subr.mxu0 0.0
    %807 = vmatpush1.msra.mxu0 0.0
    %808 = vmatprep.subr.mxu0 0.0
    %809 = vmatpush1.msra.mxu0 0.0
    %810 = vmatprep.subr.mxu0 0.0
    %811 = vmatpush1.msra.mxu0 0.0
    %812 = vmatprep.subr.mxu0 0.0
    %813 = vmatpush1.msra.mxu0 0.0
    %814 = vmatprep.subr.mxu0 0.0
    %815 = vmatpush1.msra.mxu0 0.0
    %816 = vmatprep.subr.mxu0 0.0
    %817 = vmatpush1.msra.mxu0 0.0
    %818 = vmatprep.subr.mxu0 0.0
    %819 = vmatpush1.msra.mxu0 0.0
    %820 = vmatprep.subr.mxu0 0.0
    %821 = vmatpush1.msra.mxu0 0.0
    %822 = vmatprep.subr.mxu0 0.0
    %823 = vmatpush1.msra.mxu0 0.0
    %824 = vmatprep.mubr.f32.mxu0 0.0
    %825 = vmatmul.mubr.f32.gmra.mrb[0].mxu0 %v758
    %v826 = vpop.f32.mrb[0].mxu0
    %v827 = vadd.f32 %v755, %v826
    %v828 = vpop.f32.mrb[0].mxu0
    %829 = vdwg.mxu0
    %vm830 = vcmask 7168
    %831 = vst.msk [vmem:[%s7] sm:$0xff] %vm830, %v827
    // Predicated region
    $region30: #{tpu_custom_call.1} parent=1 // pred_check
      _
    $region31: #{tpu_custom_call.1} parent=1 // pred_check_branch
      %833 = sbr.rel (0) target = $region33
    $region32: #{tpu_custom_call.1} parent=1 // pred_region
      _
    $region33: #{tpu_custom_call.1} parent=1 // pred_fallthru
      _
    // Predicated region
    $region34: #{tpu_custom_call.1} parent=1 // pred_check
      _
    $region35: #{tpu_custom_call.1} parent=1 // pred_check_branch
      %835 = sbr.rel (0) target = $region37
    $region36: #{tpu_custom_call.1} parent=1 // pred_region
      %s837 = ssub.s32 32, 32
      %838 = vsyncadd [#allocation6], %s837
      %s840 = sshll.u32 [#allocation5], 4
      %s841 = int_to_ptr.vmem [resolvable:$true] %s840
      %843 = dma.vmem_to_hbm [thread:$0]  %s841, 32, %s8, [#allocation6]
    $region37: #{tpu_custom_call.1} parent=1 // pred_fallthru
      _
    // Predicated region
    $region38: #{tpu_custom_call.1} parent=1 // pred_check
      _
    $region39: #{tpu_custom_call.1} parent=1 // pred_check_branch
      %845 = sbr.rel (0) target = $region41
    $region40: #{tpu_custom_call.1} parent=1 // pred_region
      _
    $region41: #{tpu_custom_call.1} parent=1 // pred_fallthru
      _
    // Predicated region
    $region42: #{tpu_custom_call.1} parent=1 // pred_check
      _
    $region43: #{tpu_custom_call.1} parent=1 // pred_check_branch
      %847 = sbr.rel (0) target = $region45
    $region44: #{tpu_custom_call.1} parent=1 // pred_region
      %848 = dma.done [#allocation6], 32
    $region45: #{tpu_custom_call.1} parent=1 // pred_fallthru
      _
    %849 = vsyncpa [#allocation6], 1

</llo_original>
